<compile_context>
chip_gen: v6e
topology: v6e:2x2x1
jax: 0.10.0
libtpu: 0.0.40
codegen_flags: <defaults>
</compile_context>

<pallas_src>
import functools

import jax
import jax.numpy as jnp
from jax.experimental import pallas as pl
from jax.experimental.pallas import tpu as pltpu


def _round_up(x, m):
    return (x + m - 1) // m * m


def _sublane_multiple(itemsize):
    # f32 -> 8 rows / vreg, bf16 -> 16, int8/fp8 -> 32.
    return {4: 8, 2: 16, 1: 32}.get(itemsize, 8)


def _vmem_budget_bytes():
    """Generation-aware (working-set budget, scoped VMEM limit) in bytes."""
    try:
        cap = pltpu.get_tpu_info().vmem_capacity_bytes
    except Exception:  # interpret mode / non-TPU fallback
        cap = 128 * 1024 * 1024
    # ~half of physical per-core VMEM, capped at 48 MiB:
    #   v5e/v6e (128 MiB/core) -> 48 MiB budget, v7x (64 MiB/core) -> 32 MiB budget.
    budget = min(cap // 2, 48 * 1024 * 1024)
    limit = min(cap * 3 // 4, budget + 16 * 1024 * 1024)
    return budget, limit


def _choose_tm(M, K, N_pad, x_isize, w_isize, o_isize, sublane, budget,
               max_tm=8192, min_steps=8, min_rows=256):
    """Largest sublane-aligned token tile whose working set fits the VMEM budget,
    capped so the grid has >= 2 (ideally ~min_steps) tiles when M is large."""
    # Working set: single-buffered weight + f32 bias (grid-invariant, Buffered(1))
    # plus double-buffered x and out tiles.
    fixed = w_isize * N_pad * K + 4 * N_pad
    per_row = 2 * (x_isize * K + o_isize * N_pad)
    avail = max(budget - fixed, per_row * sublane)
    tm = (avail // per_row) // sublane * sublane
    tm = max(sublane, min(tm, max_tm))
    if M > 2 * sublane:
        # >= 2 tiles (v7x megacore), ideally ~min_steps tiles (pipeline depth), but
        # keep tiles >= min_rows rows so per-step overhead stays amortized.
        target = _round_up(pl.cdiv(M, min_steps), sublane)
        floor = min(_round_up(min_rows, sublane), _round_up(pl.cdiv(M, 2), sublane))
        tm = min(tm, max(target, floor))
    return min(tm, _round_up(M, sublane))


def _linear_kernel(x_ref, w_ref, b_ref, o_ref):
    # x_ref: (TM, K)   w_ref: (K, N_pad)   b_ref: (1, N_pad) f32   o_ref: (TM, N_pad)
    acc = jnp.dot(x_ref[...], w_ref[...], preferred_element_type=jnp.float32)
    o_ref[...] = (acc + b_ref[...]).astype(o_ref.dtype)


@functools.partial(jax.jit, static_argnames=("tm", "compute_dtype"))
def temporal_token_embedding(x, weight, bias, *, tm=None, compute_dtype=None):
    """y = x @ weight.T + bias over the last axis of x (== nn.Linear forward).

    x:      (B, S, input_dim)
    weight: (embedding_dim, input_dim)   -- PyTorch nn.Linear layout
    bias:   (embedding_dim,)
    compute_dtype: optionally cast x / weight / output (e.g. jnp.bfloat16) for the
        HBM-bound production path; accumulation stays in f32.
    returns (B, S, embedding_dim)
    """
    B, S, K = x.shape
    N, Kw = weight.shape
    assert Kw == K, "weight last dim must match x last dim"

    out_dtype = compute_dtype if compute_dtype is not None else x.dtype
    if compute_dtype is not None:
        x = x.astype(compute_dtype)
        weight = weight.astype(compute_dtype)

    M = B * S
    x_isize = jnp.dtype(x.dtype).itemsize
    w_isize = jnp.dtype(weight.dtype).itemsize
    o_isize = jnp.dtype(out_dtype).itemsize
    sublane = max(_sublane_multiple(x_isize), _sublane_multiple(o_isize))

    # Lane-dense output: pad embedding dim to a multiple of 128 lanes.
    N_pad = _round_up(N, 128)

    budget, vmem_limit = _vmem_budget_bytes()
    if tm is None:
        tm = _choose_tm(M, K, N_pad, x_isize, w_isize, o_isize, sublane, budget)
    tm = max(sublane, _round_up(int(tm), sublane))
    grid_m = pl.cdiv(M, tm)   # ragged last tile handled (masked) by Pallas

    x2d = x.reshape(M, K)     # no token-axis padding

    # One-time XLA transpose / pad of the weight to the MXU-canonical (K, N_pad) layout.
    w_kn = weight.T
    b = bias
    if N_pad != N:
        w_kn = jnp.pad(w_kn, ((0, 0), (0, N_pad - N)))
        b = jnp.pad(b, (0, N_pad - N))
    b2d = b.astype(jnp.float32).reshape(1, N_pad)

    cost = pl.CostEstimate(
        flops=2 * M * K * N_pad,
        transcendentals=0,
        bytes_accessed=(M * K * x_isize + N_pad * K * w_isize
                        + N_pad * 4 + M * N_pad * o_isize),
    )

    # TODO(synk): if K * N_pad * itemsize ever outgrows the VMEM budget (large models,
    # esp. v7x's 64 MiB), add a K grid axis ("arbitrary", last) with an f32 accumulator
    # scratch + pl.when init/flush instead of keeping the full weight resident.
    out2d = pl.pallas_call(
        _linear_kernel,
        out_shape=jax.ShapeDtypeStruct((M, N_pad), out_dtype),
        grid_spec=pltpu.PrefetchScalarGridSpec(
            num_scalar_prefetch=0,
            grid=(grid_m,),
            in_specs=[
                pl.BlockSpec((tm, K), lambda i: (i, 0)),          # pipelined token tile
                pl.BlockSpec((K, N_pad), lambda i: (0, 0),
                             pipeline_mode=pl.Buffered(1)),       # invariant weight, 1 buf
                pl.BlockSpec((1, N_pad), lambda i: (0, 0),
                             pipeline_mode=pl.Buffered(1)),       # invariant f32 bias, 1 buf
            ],
            out_specs=pl.BlockSpec((tm, N_pad), lambda i: (i, 0)),
        ),
        compiler_params=pltpu.CompilerParams(
            dimension_semantics=("parallel",),    # token tiles split across TCs (v7x)
            vmem_limit_bytes=int(vmem_limit),
        ),
        cost_estimate=cost,
    )(x2d, w_kn, b2d)

    if N_pad != N:
        out2d = out2d[:, :N]
    return out2d.reshape(B, S, N)


def init_linear_params(key, input_dim, embedding_dim, dtype=jnp.float32):
    # Mimic torch.nn.Linear default init: U(-1/sqrt(in), 1/sqrt(in)).
    kw, kb = jax.random.split(key)
    bound = 1.0 / (input_dim ** 0.5)
    weight = jax.random.uniform(
        kw, (embedding_dim, input_dim), dtype=dtype, minval=-bound, maxval=bound
    )
    bias = jax.random.uniform(
        kb, (embedding_dim,), dtype=dtype, minval=-bound, maxval=bound
    )
    return weight, bias


if __name__ == "__main__":
    key = jax.random.PRNGKey(0)
    k_x, k_p = jax.random.split(key)

    batch, seq, input_dim, embedding_dim = 2, 8, 16, 32
    x = jax.random.normal(k_x, (batch, seq, input_dim), dtype=jnp.float32)
    weight, bias = init_linear_params(k_p, input_dim, embedding_dim)

    # Reference (same math as nn.Linear).
    y_ref = jnp.einsum("bsk,nk->bsn", x, weight) + bias

    # 1) Auto-chosen tile, f32 end-to-end (tight numeric check).
    y = jax.block_until_ready(temporal_token_embedding(x, weight, bias))
    assert y.shape == (batch, seq, embedding_dim)
    assert jnp.allclose(y, y_ref, atol=1e-5, rtol=1e-5)

    # 2) Ragged token count + forced small tile: exercises the multi-step pipelined
    #    grid and the Pallas-masked last tile (no wrapper-side pad / slice of M).
    x_rag = x[:, :7, :]
    y_rag = jax.block_until_ready(temporal_token_embedding(x_rag, weight, bias, tm=8))
    assert y_rag.shape == (batch, 7, embedding_dim)
    assert jnp.allclose(y_rag, y_ref[:, :7, :], atol=1e-5, rtol=1e-5)

    # 3) bf16 x / W / y (the HBM-bound production path), f32 MXU accumulation.
    y_bf16 = jax.block_until_ready(
        temporal_token_embedding(x, weight, bias, compute_dtype=jnp.bfloat16))
    assert y_bf16.dtype == jnp.bfloat16
    assert jnp.allclose(y_bf16.astype(jnp.float32), y_ref, atol=5e-2, rtol=5e-2)

    print("KERNEL_OK")
</pallas_src>

<mosaic_0001>
module attributes {stable_mosaic.version = 11 : i64} {
  func.func @_linear_kernel(%arg0: i32, %arg1: memref<16x16xf32, #tpu.memory_space<vmem>>, %arg2: memref<16x128xf32, #tpu.memory_space<vmem>>, %arg3: memref<1x128xf32, #tpu.memory_space<vmem>>, %arg4: memref<16x128xf32, #tpu.memory_space<vmem>>) attributes {dimension_semantics = [#tpu.dimension_semantics<parallel>], iteration_bounds = array<i64: 1>, scalar_prefetch = 0 : i64, scratch_operands = 0 : i64, tpu.core_type = #tpu.core_type<tc>, window_params = [{transform_indices = @transform_0, window_bounds = array<i64: 16, 16>}, {pipeline_mode = #tpu.pipeline_mode<synchronous>, transform_indices = @transform_1, window_bounds = array<i64: 16, 128>}, {pipeline_mode = #tpu.pipeline_mode<synchronous>, transform_indices = @transform_2, window_bounds = array<i64: 1, 128>}, {transform_indices = @transform_3, window_bounds = array<i64: 16, 128>}]} {
    %c0 = arith.constant 0 : index
    %c0_0 = arith.constant 0 : index
    %0 = vector.load %arg1[%c0, %c0_0] : memref<16x16xf32, #tpu.memory_space<vmem>>, vector<16x16xf32>
    %c0_1 = arith.constant 0 : index
    %c0_2 = arith.constant 0 : index
    %1 = vector.load %arg2[%c0_1, %c0_2] : memref<16x128xf32, #tpu.memory_space<vmem>>, vector<16x128xf32>
    %cst = arith.constant dense<0.000000e+00> : vector<16x128xf32>
    %2 = tpu.matmul %0, %1, %cst {dimension_numbers = #tpu.dot_dimension_numbers<[1], [0], [0], [1], [0, 0, 1, 1], [], []>} : vector<16x16xf32>, vector<16x128xf32>, vector<16x128xf32> -> vector<16x128xf32>
    %c0_3 = arith.constant 0 : index
    %c0_4 = arith.constant 0 : index
    %3 = vector.load %arg3[%c0_3, %c0_4] : memref<1x128xf32, #tpu.memory_space<vmem>>, vector<1x128xf32>
    %4 = vector.broadcast %3 : vector<1x128xf32> to vector<16x128xf32>
    %5 = arith.addf %2, %4 : vector<16x128xf32>
    %c0_5 = arith.constant 0 : index
    %c0_6 = arith.constant 0 : index
    %6 = vector.load %arg4[%c0_5, %c0_6] : memref<16x128xf32, #tpu.memory_space<vmem>>, vector<16x128xf32>
    tpu.vector_store %arg4[%c0_5, %c0_6], %5 {strides = array<i32>} : memref<16x128xf32, #tpu.memory_space<vmem>>, vector<16x128xf32>,
    return
  }
  func.func @transform_0(%arg0: i32) -> (i32, i32) {
    %c0_i32 = arith.constant 0 : i32
    %c0_i32_0 = arith.constant 0 : i32
    return %arg0, %c0_i32 : i32, i32
  }
  func.func @transform_1(%arg0: i32) -> (i32, i32) {
    %c0_i32 = arith.constant 0 : i32
    %c0_i32_0 = arith.constant 0 : i32
    %c0_i32_1 = arith.constant 0 : i32
    return %c0_i32, %c0_i32_0 : i32, i32
  }
  func.func @transform_2(%arg0: i32) -> (i32, i32) {
    %c0_i32 = arith.constant 0 : i32
    %c0_i32_0 = arith.constant 0 : i32
    %c0_i32_1 = arith.constant 0 : i32
    return %c0_i32, %c0_i32_0 : i32, i32
  }
  func.func @transform_3(%arg0: i32) -> (i32, i32) {
    %c0_i32 = arith.constant 0 : i32
    %c0_i32_0 = arith.constant 0 : i32
    return %arg0, %c0_i32 : i32, i32
  }
}

</mosaic_0001>

<llo_original>
// kernel: temporal_token_embedding.1
$region0: #{temporal_token_embedding.1}
  #allocation0 [shape = 'u32[]', space=smem, size = 0x4, offset = 0x4, fixed_abs, tag = 'smem constant byte address 0x4 - core index']
  #allocation1 [shape = 'u32[144,128]{1,0:T(1,128)}', space=vmem, size = 0x12000, scoped, tag = 'internal scratch']
  %s0 = inlined_call_operand.vmem [shape: f32[16,16], index: 0, kind: input, shape index: {}]
  %s1 = inlined_call_operand.vmem [shape: f32[16,128], index: 1, kind: input, shape index: {}]
  %s2 = inlined_call_operand.vmem [shape: f32[1,128], index: 2, kind: input, shape index: {}]
  %s3 = inlined_call_operand.vmem [shape: f32[16,128], index: 3, kind: output, shape index: {}]
  %s4 = sld [smem:[#allocation0]]
  $region22: #{temporal_token_embedding.1} parent=0
    _
  %s6 = ssub.s32 1, %s4
  %s7 = scalar_select 0, %s6, %s4
  // Predicated region
  $region2: #{temporal_token_embedding.1} parent=0 // pred_check
    _
  $region3: #{temporal_token_embedding.1} parent=0 // pred_check_branch
    %9 = sbr.rel (0) target = $region5
  $region4: #{temporal_token_embedding.1} parent=0 // pred_region
    _
  $region5: #{temporal_token_embedding.1} parent=0 // pred_fallthru
    _
  // Predicated region
  $region6: #{temporal_token_embedding.1} parent=0 // pred_check
    _
  $region7: #{temporal_token_embedding.1} parent=0 // pred_check_branch
    %11 = sbr.rel (0) target = $region9
  $region8: #{temporal_token_embedding.1} parent=0 // pred_region
    _
  $region9: #{temporal_token_embedding.1} parent=0 // pred_fallthru
    _
  // Predicated region
  $region10: #{temporal_token_embedding.1} parent=0 // pred_check
    _
  $region11: #{temporal_token_embedding.1} parent=0 // pred_check_branch
    %13 = sbr.rel (0) target = $region13
  $region12: #{temporal_token_embedding.1} parent=0 // pred_region
    _
  $region13: #{temporal_token_embedding.1} parent=0 // pred_fallthru
    _
  %v14 = vld [vmem:[%s0] sm:$0xff]
  %v15 = vld [vmem:[%s0 + $0x8] sm:$0xff]
  %v16 = vld [vmem:[%s1] sm:$0xff]
  %v17 = vld [vmem:[%s1 + $0x8] sm:$0xff]
  %v18 = vld [vmem:[%s2] sm:$0x1]
  %v20 = vlaneseq
  %v21 = vshrl.u32 %v20, 7
  %v22 = vsub.s32 0, %v21
  %v23 = vrot.slane %v18, %v22
  %vm25 = vcmask 130048
  %v27 = vsel %vm25, %v14, 0
  %v30 = vsel %vm25, %v15, 0
  %32 = vmatprep.subr.mxu0 0.0
  %33 = vmatpush1.msra.mxu0 0.0
  %34 = vmatprep.subr.mxu0 0.0
  %35 = vmatpush1.msra.mxu0 0.0
  %36 = vmatprep.subr.mxu0 0.0
  %37 = vmatpush1.msra.mxu0 0.0
  %38 = vmatprep.subr.mxu0 0.0
  %39 = vmatpush1.msra.mxu0 0.0
  %40 = vmatprep.subr.mxu0 0.0
  %41 = vmatpush1.msra.mxu0 0.0
  %42 = vmatprep.subr.mxu0 0.0
  %43 = vmatpush1.msra.mxu0 0.0
  %44 = vmatprep.subr.mxu0 0.0
  %45 = vmatpush1.msra.mxu0 0.0
  %46 = vmatprep.subr.mxu0 0.0
  %47 = vmatpush1.msra.mxu0 0.0
  %48 = vmatprep.subr.mxu0 0.0
  %49 = vmatpush1.msra.mxu0 0.0
  %50 = vmatprep.subr.mxu0 0.0
  %51 = vmatpush1.msra.mxu0 0.0
  %52 = vmatprep.subr.mxu0 0.0
  %53 = vmatpush1.msra.mxu0 0.0
  %54 = vmatprep.subr.mxu0 0.0
  %55 = vmatpush1.msra.mxu0 0.0
  %56 = vmatprep.subr.mxu0 0.0
  %57 = vmatpush1.msra.mxu0 0.0
  %58 = vmatprep.subr.mxu0 0.0
  %59 = vmatpush1.msra.mxu0 0.0
  %60 = vmatprep.subr.mxu0 0.0
  %61 = vmatpush1.msra.mxu0 %v17
  %62 = vmatprep.subr.mxu0 0.0
  %63 = vmatpush1.msra.mxu0 %v16
  %64 = vmatprep.subr.mxu0 0.0
  %65 = vmatpush2.msra.mxu0 0.0
  %66 = vmatprep.subr.mxu0 0.0
  %67 = vmatpush2.msra.mxu0 0.0
  %68 = vmatprep.subr.mxu0 0.0
  %69 = vmatpush2.msra.mxu0 0.0
  %70 = vmatprep.subr.mxu0 0.0
  %71 = vmatpush2.msra.mxu0 0.0
  %72 = vmatprep.subr.mxu0 0.0
  %73 = vmatpush2.msra.mxu0 0.0
  %74 = vmatprep.subr.mxu0 0.0
  %75 = vmatpush2.msra.mxu0 0.0
  %76 = vmatprep.subr.mxu0 0.0
  %77 = vmatpush2.msra.mxu0 0.0
  %78 = vmatprep.subr.mxu0 0.0
  %79 = vmatpush2.msra.mxu0 0.0
  %80 = vmatprep.subr.mxu0 0.0
  %81 = vmatpush2.msra.mxu0 0.0
  %82 = vmatprep.subr.mxu0 0.0
  %83 = vmatpush2.msra.mxu0 0.0
  %84 = vmatprep.subr.mxu0 0.0
  %85 = vmatpush2.msra.mxu0 0.0
  %86 = vmatprep.subr.mxu0 0.0
  %87 = vmatpush2.msra.mxu0 0.0
  %88 = vmatprep.subr.mxu0 0.0
  %89 = vmatpush2.msra.mxu0 0.0
  %90 = vmatprep.subr.mxu0 0.0
  %91 = vmatpush2.msra.mxu0 0.0
  %92 = vmatprep.subr.mxu0 0.0
  %93 = vmatpush2.msra.mxu0 0.0
  %94 = vmatprep.subr.mxu0 0.0
  %95 = vmatpush2.msra.mxu0 0.0
  %96 = vmatprep.mubr.f32.mxu0 0.0
  %97 = vmatmul.mubr.f32.gmra.mxu0 %v27
  %v98 = vpop.f32.mrf.mxu0
  %v99 = vadd.f32 %v23, %v98
  %v100 = vpop.f32.mrf.mxu0
  %101 = vmatprep.mubr.f32.mxu0 0.0
  %102 = vmatmul.mubr.f32.gmra.mxu0 %v30
  %v103 = vpop.f32.mrf.mxu0
  %v104 = vadd.f32 %v23, %v103
  %v105 = vpop.f32.mrf.mxu0
  %106 = vdwg.mxu0
  %107 = vst [vmem:[%s3] sm:$0xff] %v99
  %108 = vst [vmem:[%s3 + $0x8] sm:$0xff] %v104
  // Predicated region
  $region14: #{temporal_token_embedding.1} parent=0 // pred_check
    _
  $region15: #{temporal_token_embedding.1} parent=0 // pred_check_branch
    %110 = sbr.rel (0) target = $region17
  $region16: #{temporal_token_embedding.1} parent=0 // pred_region
    _
  $region17: #{temporal_token_embedding.1} parent=0 // pred_fallthru
    _
  // Predicated region
  $region18: #{temporal_token_embedding.1} parent=0 // pred_check
    _
  $region19: #{temporal_token_embedding.1} parent=0 // pred_check_branch
    %112 = sbr.rel (0) target = $region21
  $region20: #{temporal_token_embedding.1} parent=0 // pred_region
    _
  $region21: #{temporal_token_embedding.1} parent=0 // pred_fallthru
    _

</llo_original>
